<compile_context>
chip_gen: v7x
topology: tpu7x:2x2x1
jax: 0.10.0
libtpu: 0.0.40
codegen_flags: <defaults>
</compile_context>

<pallas_src>
import jax
import jax.numpy as jnp
from jax.experimental import pallas as pl
from jax.experimental.pallas import tpu as pltpu


def _round_up(n, m):
    return ((n + m - 1) // m) * m


# --------------------------------------------------------------------------
# Kernels
# --------------------------------------------------------------------------

def _residual_kernel_single(x_ref, w_ref, b_ref, o_ref):
    # Single N tile: x_ref (tm, Dp) is both the matmul input and the residual.
    # w_ref (Dp, Dp) is pre-transposed to (in, out) layout.
    x = x_ref[...]
    h = jnp.dot(x.astype(w_ref.dtype), w_ref[...],
                preferred_element_type=jnp.float32)
    h = jnp.maximum(h + b_ref[...], 0.0)
    o_ref[...] = (h + x).astype(o_ref.dtype)


def _residual_kernel_tiled(x_ref, xres_ref, w_ref, b_ref, o_ref):
    # Multiple N tiles: x_ref (tm, Dp) feeds the matmul (same block across j,
    # so it is DMA'd once per batch tile); xres_ref (tm, tn) is the residual
    # slice matching this output tile; w_ref (Dp, tn) streams.
    h = jnp.dot(x_ref[...].astype(w_ref.dtype), w_ref[...],
                preferred_element_type=jnp.float32)
    h = jnp.maximum(h + b_ref[...], 0.0)
    o_ref[...] = (h + xres_ref[...]).astype(o_ref.dtype)


# --------------------------------------------------------------------------
# Sizing helpers
# --------------------------------------------------------------------------

def _vmem_budget_bytes():
    # Per-generation VMEM budget: physical capacity minus headroom, clamped.
    # Defaults to the most conservative generation (v7x: 64 MiB) if the
    # hardware-info query is unavailable.  This guard only covers the info
    # query; it never masks kernel lowering/compile errors.
    phys = 64 << 20
    try:
        phys = int(pltpu.get_tpu_info().vmem_capacity_bytes)
    except Exception:
        pass
    return max(min(int(phys * 0.8), phys - (8 << 20)), 16 << 20)


def _largest_dividing_tile(dp, target):
    # Largest multiple of 128 that divides dp and is <= target (>= 128).
    best = 128
    cap = min(dp, max(target, 128))
    t = 128
    while t <= cap:
        if dp % t == 0:
            best = t
        t += 128
    return best


def _pick_tiles(b, dp, w_itemsize, budget, tm=None, tn=None):
    if tm is None:
        tm = min(_round_up(b, 8), 512)      # sweep candidate: biggest that fits
    if tn is None:
        tn = _largest_dividing_tile(dp, 512)

    def need(tm_, tn_):
        multi = dp > tn_
        return (2 * tm_ * dp * 4                           # x tiles (f32, 2-buf)
                + (2 * tm_ * tn_ * 4 if multi else 0)      # residual slice tiles
                + 2 * dp * tn_ * w_itemsize                # weight tiles
                + 2 * 8 * tn_ * 4                          # bias tiles (sublane-padded)
                + 2 * tm_ * tn_ * 4)                       # output tiles

    while need(tm, tn) > budget and tn > 128:
        tn = _largest_dividing_tile(dp, tn // 2)
    while need(tm, tn) > budget and tm > 8:
        tm = max(8, ((tm // 2) + 7) // 8 * 8)
    # TODO(synk): add a K (contraction) grid axis with a VMEM f32 accumulator
    # if even (tm=8, tn=128) blocks exceed the VMEM budget (dp >~ 90k).
    return tm, tn


# --------------------------------------------------------------------------
# Parameter prep (do ONCE, reuse across calls) and apply
# --------------------------------------------------------------------------

def prepare_residual_block_params(weight, bias, *, mxu_dtype=jnp.bfloat16):
    """One-time weight/bias prep.  `weight` is nn.Linear layout (out, in).

    Returns (w_prepped, b_prepped, dim):
      w_prepped: (Dp, Dp) mxu_dtype, (in, out) layout, zero-padded to a lane
                 multiple.
      b_prepped: (1, Dp) float32, zero-padded.
    Cache the result (e.g. at parameter-load time); rebuilding it every call
    doubles HBM traffic in the weight-bound small-batch regime.
    """
    d_out, d_in = weight.shape
    assert d_out == d_in, "ResidualBlock requires a square Linear"
    d = d_in
    assert bias.shape == (d,)
    dp = _round_up(d, 128)
    w_t = jnp.asarray(weight).T                      # (in, out) layout
    b = jnp.asarray(bias)
    if dp != d:
        w_t = jnp.pad(w_t, ((0, dp - d), (0, dp - d)))
        b = jnp.pad(b, (0, dp - d))
    return w_t.astype(mxu_dtype), b.reshape(1, dp).astype(jnp.float32), d


def residual_block_apply(x, w_prepped, b_prepped, dim, *,
                         out_dtype=None, tm=None, tn=None):
    """ResidualBlock forward with pre-prepared parameters."""
    orig_shape = x.shape
    if x.ndim != 2:
        x = x.reshape(-1, orig_shape[-1])
    b_rows, d = x.shape
    assert d == dim, f"input feature dim {d} != prepared dim {dim}"
    dp = w_prepped.shape[0]
    assert w_prepped.shape == (dp, dp) and dp % 128 == 0 and dp >= d
    assert b_prepped.shape == (1, dp)
    out_dtype = x.dtype if out_dtype is None else out_dtype

    xp = x
    if dp != d:
        xp = jnp.pad(x, ((0, 0), (0, dp - d)))       # zero lanes -> zero contributions

    budget = _vmem_budget_bytes()
    w_isize = jnp.dtype(w_prepped.dtype).itemsize
    tm, tn = _pick_tiles(b_rows, dp, w_isize, budget, tm, tn)
    assert tm % 8 == 0 and tn % 128 == 0 and dp % tn == 0

    mi = pl.cdiv(b_rows, tm)
    nj = dp // tn
    multi = nj > 1

    cost = pl.CostEstimate(
        flops=int(2 * b_rows * dp * dp + 3 * b_rows * dp),
        transcendentals=0,
        bytes_accessed=int((2 if multi else 1) * b_rows * dp * 4
                           + mi * dp * dp * w_isize
                           + dp * 4
                           + b_rows * dp * jnp.dtype(out_dtype).itemsize),
    )
    params = pltpu.CompilerParams(
        dimension_semantics=("parallel", "parallel"),
        vmem_limit_bytes=int(budget),
    )

    x_spec = pl.BlockSpec((tm, dp), lambda i, j: (i, 0))
    w_spec = pl.BlockSpec((dp, tn), lambda i, j: (0, j))
    b_spec = pl.BlockSpec((1, tn), lambda i, j: (0, j))
    o_spec = pl.BlockSpec((tm, tn), lambda i, j: (i, j))

    if multi:
        kernel = _residual_kernel_tiled
        in_specs = [x_spec,
                    pl.BlockSpec((tm, tn), lambda i, j: (i, j)),  # residual slice
                    w_spec, b_spec]
        operands = (xp, xp, w_prepped, b_prepped)
    else:
        kernel = _residual_kernel_single
        in_specs = [x_spec, w_spec, b_spec]
        operands = (xp, w_prepped, b_prepped)

    out = pl.pallas_call(
        kernel,
        out_shape=jax.ShapeDtypeStruct((b_rows, dp), out_dtype),
        grid=(mi, nj),
        in_specs=in_specs,
        out_specs=o_spec,
        compiler_params=params,
        cost_estimate=cost,
    )(*operands)

    if dp != d:
        out = out[:, :d]
    return out.reshape(orig_shape) if len(orig_shape) != 2 else out


def residual_block(x, weight, bias, *, mxu_dtype=jnp.bfloat16, **kwargs):
    """One-off convenience: prep + apply.  For repeated calls, call
    prepare_residual_block_params once and reuse with residual_block_apply."""
    w_p, b_p, dim = prepare_residual_block_params(weight, bias, mxu_dtype=mxu_dtype)
    return residual_block_apply(x, w_p, b_p, dim, **kwargs)


# --------------------------------------------------------------------------
# Demo / self-check
# --------------------------------------------------------------------------

if __name__ == "__main__":
    key = jax.random.PRNGKey(0)

    def init_linear(k, dim):
        kw, kb = jax.random.split(k)
        bound = 1.0 / (dim ** 0.5)
        w = jax.random.uniform(kw, (dim, dim), jnp.float32, -bound, bound)  # (out, in)
        b = jax.random.uniform(kb, (dim,), jnp.float32, -bound, bound)
        return w, b

    def ref_f32(x, w, b):
        return jnp.maximum(x @ w.T + b, 0.0) + x

    k1, k2, k3, kx1, kx2, kx3 = jax.random.split(key, 6)

    # --- Case 1: dim=128, batch=16 (module-typical small shapes) ------------
    w1, b1 = init_linear(k1, 128)
    x1 = jax.random.normal(kx1, (16, 128), jnp.float32)
    wp1, bp1, d1 = prepare_residual_block_params(w1, b1)   # prep once, reuse
    out1 = jax.block_until_ready(residual_block_apply(x1, wp1, bp1, d1))
    ref1_bf16 = (jnp.maximum(
        jnp.dot(x1.astype(jnp.bfloat16), wp1,
                preferred_element_type=jnp.float32) + b1, 0.0) + x1)
    assert out1.shape == (16, 128)
    assert jnp.allclose(out1, ref1_bf16, atol=2e-3, rtol=2e-3), "mismatch vs bf16 ref"
    assert jnp.allclose(out1, ref_f32(x1, w1, b1), atol=5e-2, rtol=5e-2), \
        "mismatch vs f32 ref"

    # --- Case 2: dim not a lane multiple (96), ragged batch (10) ------------
    w2, b2 = init_linear(k2, 96)
    x2 = jax.random.normal(kx2, (10, 96), jnp.float32)
    out2 = jax.block_until_ready(residual_block(x2, w2, b2))
    assert out2.shape == (10, 96)
    assert jnp.allclose(out2, ref_f32(x2, w2, b2), atol=5e-2, rtol=5e-2), \
        "mismatch (padded-feature path)"

    # --- Case 3: exercise the N-tiled path + ragged batch edge --------------
    w3, b3 = init_linear(k3, 256)
    x3 = jax.random.normal(kx3, (24, 256), jnp.float32)
    wp3, bp3, d3 = prepare_residual_block_params(w3, b3)
    out3 = jax.block_until_ready(
        residual_block_apply(x3, wp3, bp3, d3, tm=16, tn=128))
    assert out3.shape == (24, 256)
    assert jnp.allclose(out3, ref_f32(x3, w3, b3), atol=5e-2, rtol=5e-2), \
        "mismatch (N-tiled path)"

    print("KERNEL_OK")
</pallas_src>

<mosaic_0001>
module attributes {stable_mosaic.version = 11 : i64} {
  func.func @_residual_kernel_single(%arg0: i32, %arg1: i32, %arg2: memref<16x128xf32, #tpu.memory_space<vmem>>, %arg3: memref<128x128xbf16, #tpu.memory_space<vmem>>, %arg4: memref<1x128xf32, #tpu.memory_space<vmem>>, %arg5: memref<16x128xf32, #tpu.memory_space<vmem>>) attributes {dimension_semantics = [#tpu.dimension_semantics<parallel>, #tpu.dimension_semantics<parallel>], iteration_bounds = array<i64: 1, 1>, scalar_prefetch = 0 : i64, scratch_operands = 0 : i64, tpu.core_type = #tpu.core_type<tc>, window_params = [{transform_indices = @transform_0, window_bounds = array<i64: 16, 128>}, {transform_indices = @transform_1, window_bounds = array<i64: 128, 128>}, {transform_indices = @transform_2, window_bounds = array<i64: 1, 128>}, {transform_indices = @transform_3, window_bounds = array<i64: 16, 128>}]} {
    %c0 = arith.constant 0 : index
    %c0_0 = arith.constant 0 : index
    %0 = vector.load %arg2[%c0, %c0_0] : memref<16x128xf32, #tpu.memory_space<vmem>>, vector<16x128xf32>
    %1 = arith.truncf %0 : vector<16x128xf32> to vector<16x128xbf16>
    %c0_1 = arith.constant 0 : index
    %c0_2 = arith.constant 0 : index
    %2 = vector.load %arg3[%c0_1, %c0_2] : memref<128x128xbf16, #tpu.memory_space<vmem>>, vector<128x128xbf16>
    %cst = arith.constant dense<0.000000e+00> : vector<16x128xf32>
    %3 = tpu.matmul %1, %2, %cst {dimension_numbers = #tpu.dot_dimension_numbers<[1], [0], [0], [1], [0, 0, 1, 1], [], []>} : vector<16x128xbf16>, vector<128x128xbf16>, vector<16x128xf32> -> vector<16x128xf32>
    %c0_3 = arith.constant 0 : index
    %c0_4 = arith.constant 0 : index
    %4 = vector.load %arg4[%c0_3, %c0_4] : memref<1x128xf32, #tpu.memory_space<vmem>>, vector<1x128xf32>
    %5 = vector.broadcast %4 : vector<1x128xf32> to vector<16x128xf32>
    %6 = arith.addf %3, %5 : vector<16x128xf32>
    %cst_5 = arith.constant 0.000000e+00 : f32
    %7 = vector.broadcast %cst_5 : f32 to vector<16x128xf32>
    %8 = arith.maximumf %6, %7 : vector<16x128xf32>
    %9 = arith.addf %8, %0 : vector<16x128xf32>
    %c0_6 = arith.constant 0 : index
    %c0_7 = arith.constant 0 : index
    %10 = vector.load %arg5[%c0_6, %c0_7] : memref<16x128xf32, #tpu.memory_space<vmem>>, vector<16x128xf32>
    tpu.vector_store %arg5[%c0_6, %c0_7], %9 {strides = array<i32>} : memref<16x128xf32, #tpu.memory_space<vmem>>, vector<16x128xf32>,
    return
  }
  func.func @transform_0(%arg0: i32, %arg1: i32) -> (i32, i32) {
    %c0_i32 = arith.constant 0 : i32
    %c0_i32_0 = arith.constant 0 : i32
    return %arg0, %c0_i32 : i32, i32
  }
  func.func @transform_1(%arg0: i32, %arg1: i32) -> (i32, i32) {
    %c0_i32 = arith.constant 0 : i32
    %c0_i32_0 = arith.constant 0 : i32
    return %c0_i32, %arg1 : i32, i32
  }
  func.func @transform_2(%arg0: i32, %arg1: i32) -> (i32, i32) {
    %c0_i32 = arith.constant 0 : i32
    %c0_i32_0 = arith.constant 0 : i32
    return %c0_i32, %arg1 : i32, i32
  }
  func.func @transform_3(%arg0: i32, %arg1: i32) -> (i32, i32) {
    %c0_i32 = arith.constant 0 : i32
    return %arg0, %arg1 : i32, i32
  }
}

</mosaic_0001>

<llo_original>
// kernel: tpu_custom_call.1
$region0: #{tpu_custom_call.1}
  #allocation0 [shape = 'u32[]', space=smem, size = 0x4, offset = 0x4, fixed_abs, tag = 'smem constant byte address 0x4 - core index']
  #allocation1 [shape = 'u32[144,128]{1,0:T(1,128)}', space=vmem, size = 0x12000, scoped, tag = 'internal scratch']
  %s0 = inlined_call_operand.hbm [shape: f32[16,128], index: 0, kind: input, shape index: {}]
  %s1 = inlined_call_operand.hbm [shape: bf16[128,128], index: 1, kind: input, shape index: {}]
  %s2 = inlined_call_operand.vmem [shape: f32[1,128], index: 2, kind: input, shape index: {}]
  %s3 = inlined_call_operand.hbm [shape: f32[16,128], index: 3, kind: output, shape index: {}]
  %s4 = sld [smem:[#allocation0]]
  $region30: #{tpu_custom_call.1} parent=0
    _
  %s6 = ssub.s32 1, %s4
  %s7 = scalar_select 0, %s6, %s4
  $region1: #{tpu_custom_call.1} parent=0
    #allocation2 [shape = 'u8[8192]{0}', space=vmem, size = 0x2000, scoped, tag = 'input window, operand 0, single buffered']
    #allocation3 [shape = 's32[1]{0}', space=sflag, size = 0x4, scoped, tag = 'scoped memory for tpu_custom_call.1']
    #allocation4 [shape = 's32[1]{0}', space=sflag, size = 0x4, scoped, tag = 'scoped memory for tpu_custom_call.1']
    #allocation5 [shape = 'u8[32768]{0}', space=vmem, size = 0x8000, scoped, tag = 'input window, operand 1, single buffered']
    #allocation6 [shape = 's32[1]{0}', space=sflag, size = 0x4, scoped, tag = 'scoped memory for tpu_custom_call.1']
    #allocation7 [shape = 'u8[8192]{0}', space=vmem, size = 0x2000, scoped, tag = 'output window, operand 0, single buffered']
    %8 = vsyncpa [#allocation3], 0
    %9 = vsyncpa [#allocation6], 0
    %10 = vsyncpa [#allocation4], 0
    // Predicated region
    $region2: #{tpu_custom_call.1} parent=1 // pred_check
      _
    $region3: #{tpu_custom_call.1} parent=1 // pred_check_branch
      %12 = sbr.rel (0) target = $region5
    $region4: #{tpu_custom_call.1} parent=1 // pred_region
      %s14 = ssub.s32 256, 256
      %15 = vsyncadd [#allocation3], %s14
      %s16 = sshll.u32 [#allocation2], 4
      %s17 = int_to_ptr.vmem [resolvable:$true] %s16
      %22 = dma.hbm_to_vmem [thread:$0]  %s0, 256, %s17, [#allocation3], 128, 128, 8
    $region5: #{tpu_custom_call.1} parent=1 // pred_fallthru
      _
    // Predicated region
    $region6: #{tpu_custom_call.1} parent=1 // pred_check
      _
    $region7: #{tpu_custom_call.1} parent=1 // pred_check_branch
      %24 = sbr.rel (0) target = $region9
    $region8: #{tpu_custom_call.1} parent=1 // pred_region
      %s26 = ssub.s32 1024, 1024
      %27 = vsyncadd [#allocation6], %s26
      %s28 = sshll.u32 [#allocation5], 4
      %s29 = int_to_ptr.vmem [resolvable:$true] %s28
      %34 = dma.hbm_to_vmem [thread:$0]  %s1, 1024, %s29, [#allocation6], 64, 64, 4
    $region9: #{tpu_custom_call.1} parent=1 // pred_fallthru
      _
    // Predicated region
    $region10: #{tpu_custom_call.1} parent=1 // pred_check
      _
    $region11: #{tpu_custom_call.1} parent=1 // pred_check_branch
      %36 = sbr.rel (0) target = $region13
    $region12: #{tpu_custom_call.1} parent=1 // pred_region
      _
    $region13: #{tpu_custom_call.1} parent=1 // pred_fallthru
      _
    // Predicated region
    $region14: #{tpu_custom_call.1} parent=1 // pred_check
      _
    $region15: #{tpu_custom_call.1} parent=1 // pred_check_branch
      %38 = sbr.rel (0) target = $region17
    $region16: #{tpu_custom_call.1} parent=1 // pred_region
      %39 = dma.done [#allocation3], 256
    $region17: #{tpu_custom_call.1} parent=1 // pred_fallthru
      _
    // Predicated region
    $region18: #{tpu_custom_call.1} parent=1 // pred_check
      _
    $region19: #{tpu_custom_call.1} parent=1 // pred_check_branch
      %41 = sbr.rel (0) target = $region21
    $region20: #{tpu_custom_call.1} parent=1 // pred_region
      %42 = dma.done [#allocation6], 1024
    $region21: #{tpu_custom_call.1} parent=1 // pred_fallthru
      _
    %v44 = vld [vmem:[#allocation2] sm:$0xff]
    %v45 = vld [vmem:[#allocation2 + $0x8] sm:$0xff]
    %v46 = vpack.c.bf16 %v45, %v44
    %v47 = vld [vmem:[#allocation5] sm:$0xf]
    %v48 = vld [vmem:[#allocation5 + $0x4] sm:$0xf]
    %v49 = vld [vmem:[#allocation5 + $0x8] sm:$0xf]
    %v50 = vld [vmem:[#allocation5 + $0xc] sm:$0xf]
    %v51 = vld [vmem:[#allocation5 + $0x10] sm:$0xf]
    %v52 = vld [vmem:[#allocation5 + $0x14] sm:$0xf]
    %v53 = vld [vmem:[#allocation5 + $0x18] sm:$0xf]
    %v54 = vld [vmem:[#allocation5 + $0x1c] sm:$0xf]
    %v55 = vld [vmem:[#allocation5 + $0x20] sm:$0xf]
    %v56 = vld [vmem:[#allocation5 + $0x24] sm:$0xf]
    %v57 = vld [vmem:[#allocation5 + $0x28] sm:$0xf]
    %v58 = vld [vmem:[#allocation5 + $0x2c] sm:$0xf]
    %v59 = vld [vmem:[#allocation5 + $0x30] sm:$0xf]
    %v60 = vld [vmem:[#allocation5 + $0x34] sm:$0xf]
    %v61 = vld [vmem:[#allocation5 + $0x38] sm:$0xf]
    %v62 = vld [vmem:[#allocation5 + $0x3c] sm:$0xf]
    %v63 = vld [vmem:[%s2] sm:$0x1]
    %v65 = vlaneseq
    %v66 = vshrl.u32 %v65, 7
    %v67 = vsub.s32 0, %v66
    %v68 = vrot.slane %v63, %v67
    %v86 = vunpack.c.l.b16 %v47
    %v87 = vunpack.c.l.b16 %v48
    %v88 = vunpack.c.l.b16 %v49
    %v89 = vunpack.c.l.b16 %v50
    %v90 = vunpack.c.l.b16 %v51
    %v91 = vunpack.c.l.b16 %v52
    %v92 = vunpack.c.l.b16 %v53
    %v93 = vunpack.c.l.b16 %v54
    %v94 = vunpack.c.l.b16 %v55
    %v95 = vunpack.c.l.b16 %v56
    %v96 = vunpack.c.l.b16 %v57
    %v97 = vunpack.c.l.b16 %v58
    %v98 = vunpack.c.l.b16 %v59
    %v99 = vunpack.c.l.b16 %v60
    %v100 = vunpack.c.l.b16 %v61
    %v101 = vunpack.c.l.b16 %v62
    %v102 = vpack.c.b16 %v87, %v86
    %v103 = vpack.c.b16 %v89, %v88
    %v104 = vpack.c.b16 %v91, %v90
    %v105 = vpack.c.b16 %v93, %v92
    %v106 = vpack.c.b16 %v95, %v94
    %v107 = vpack.c.b16 %v97, %v96
    %v108 = vpack.c.b16 %v99, %v98
    %v109 = vpack.c.b16 %v101, %v100
    %118 = vmatprep.subr.bf16.mxu0 0
    %119 = vmatpush1.bf16.msra.mxu0 %v102
    %120 = vmatprep.subr.bf16.mxu0 0
    %121 = vmatpush1.bf16.msra.mxu0 %v103
    %122 = vmatprep.subr.bf16.mxu0 0
    %123 = vmatpush1.bf16.msra.mxu0 %v104
    %124 = vmatprep.subr.bf16.mxu0 0
    %125 = vmatpush1.bf16.msra.mxu0 %v105
    %126 = vmatprep.subr.bf16.mxu0 0
    %127 = vmatpush1.bf16.msra.mxu0 %v106
    %128 = vmatprep.subr.bf16.mxu0 0
    %129 = vmatpush1.bf16.msra.mxu0 %v107
    %130 = vmatprep.subr.bf16.mxu0 0
    %131 = vmatpush1.bf16.msra.mxu0 %v108
    %132 = vmatprep.subr.bf16.mxu0 0
    %133 = vmatpush1.bf16.msra.mxu0 %v109
    %134 = vmatprep.subr.bf16.mxu0 0
    %135 = vmatpush1.bf16.msra.mxu0 0
    %136 = vmatprep.subr.bf16.mxu0 0
    %137 = vmatpush1.bf16.msra.mxu0 0
    %138 = vmatprep.subr.bf16.mxu0 0
    %139 = vmatpush1.bf16.msra.mxu0 0
    %140 = vmatprep.subr.bf16.mxu0 0
    %141 = vmatpush1.bf16.msra.mxu0 0
    %142 = vmatprep.subr.bf16.mxu0 0
    %143 = vmatpush1.bf16.msra.mxu0 0
    %144 = vmatprep.subr.bf16.mxu0 0
    %145 = vmatpush1.bf16.msra.mxu0 0
    %146 = vmatprep.subr.bf16.mxu0 0
    %147 = vmatpush1.bf16.msra.mxu0 0
    %148 = vmatprep.subr.bf16.mxu0 0
    %149 = vmatpush1.bf16.msra.mxu0 0
    %150 = vmatprep.mubr.bf16.mxu0 0
    %151 = vmatmul.mubr.bf16.gmra.mrb[0].mxu0 %v46
    %v152 = vpop.f32.mrb[0].mxu0
    %v153 = vadd.f32 %v68, %v152
    %v154 = vpop.f32.mrb[0].mxu0
    %v155 = vpop.f32.mrb[0].mxu0
    %v156 = vadd.f32 %v68, %v155
    %v157 = vpop.f32.mrb[0].mxu0
    %158 = vdwg.mxu0
    %v159 = vmax.f32 %v153, 0.0
    %v160 = vmax.f32 %v156, 0.0
    %v161 = vadd.f32 %v159, %v44
    %v162 = vadd.f32 %v160, %v45
    %163 = vst [vmem:[#allocation7] sm:$0xff] %v161
    %164 = vst [vmem:[#allocation7 + $0x8] sm:$0xff] %v162
    // Predicated region
    $region22: #{tpu_custom_call.1} parent=1 // pred_check
      _
    $region23: #{tpu_custom_call.1} parent=1 // pred_check_branch
      %166 = sbr.rel (0) target = $region25
    $region24: #{tpu_custom_call.1} parent=1 // pred_region
      %s168 = ssub.s32 256, 256
      %169 = vsyncadd [#allocation4], %s168
      %s170 = sshll.u32 [#allocation7], 4
      %s171 = int_to_ptr.vmem [resolvable:$true] %s170
      %176 = dma.vmem_to_hbm [thread:$0]  %s171, 256, %s3, [#allocation4], 128, 128, 8
    $region25: #{tpu_custom_call.1} parent=1 // pred_fallthru
      _
    // Predicated region
    $region26: #{tpu_custom_call.1} parent=1 // pred_check
      _
    $region27: #{tpu_custom_call.1} parent=1 // pred_check_branch
      %178 = sbr.rel (0) target = $region29
    $region28: #{tpu_custom_call.1} parent=1 // pred_region
      %179 = dma.done [#allocation4], 256
    $region29: #{tpu_custom_call.1} parent=1 // pred_fallthru
      _
    %180 = vsyncpa [#allocation3], 1
    %181 = vsyncpa [#allocation6], 1
    %182 = vsyncpa [#allocation4], 1

</llo_original>
